<compile_context>
chip_gen: v7x
topology: tpu7x:2x2x1
jax: 0.10.0
libtpu: 0.0.40
codegen_flags: <defaults>
</compile_context>

<pallas_src>
import functools

import jax
import jax.numpy as jnp
from jax.experimental import pallas as pl
from jax.experimental.pallas import tpu as pltpu


def _relu_conv3x3_kernel(x_ref, w_ref, o_ref, *, H, W):
    # x_ref: (Cin, H*W)      pre-ReLU activation (f32), spatial flattened on lanes
    # w_ref: (9, Cout, Cin)  bf16 weights, tap index = kh*3 + kw
    # o_ref: (Cout, H*W)     output in CHW order (f32)
    HW = H * W
    Cout = o_ref.shape[0]

    # ReLU on the VPU in f32, then pack to bf16 for the MXU (f32 accumulation below).
    xb = jnp.maximum(x_ref[...], 0.0).astype(jnp.bfloat16)          # (Cin, HW)

    # Column-validity masks for dx = -1 / +1, generated in-kernel from an iota.
    # (eq/or chain over the H row starts: avoids vector div/mod; H, W are tiny & static.)
    p = jax.lax.broadcasted_iota(jnp.int32, (Cout, HW), 1)
    is_col_first = functools.reduce(jnp.logical_or,
                                    [p == r * W for r in range(H)])
    is_col_last = functools.reduce(jnp.logical_or,
                                   [p == r * W + (W - 1) for r in range(H)])
    col_ok = {-1: jnp.logical_not(is_col_first),   # tap reads column c-1 -> need c >= 1
              1: jnp.logical_not(is_col_last)}     # tap reads column c+1 -> need c <= W-2

    acc = jnp.zeros((Cout, HW), jnp.float32)
    for kh in range(3):                            # fully unrolled at trace time (9 taps)
        dy = kh - 1
        for kw in range(3):
            dx = kw - 1
            tap = kh * 3 + kw
            # One small MXU dot per tap on the UNshifted activation.
            y = jnp.dot(w_ref[tap], xb,
                        preferred_element_type=jnp.float32)          # (Cout, HW) f32
            # Shift the tiny result by s = dy*W + dx along the lane axis; source indices
            # falling outside [0, HW) read zeros (row over/underflow handled for free).
            s = dy * W + dx
            if s > 0:
                y = jnp.concatenate(
                    [y[:, s:], jnp.zeros((Cout, s), jnp.float32)], axis=1)
            elif s < 0:
                y = jnp.concatenate(
                    [jnp.zeros((Cout, -s), jnp.float32), y[:, :HW + s]], axis=1)
            # Columns whose c + dx wrapped across an image row are invalid.
            if dx != 0:
                y = jnp.where(col_ok[dx], y, 0.0)
            acc = acc + y
    o_ref[...] = acc.astype(o_ref.dtype)


def pack_weights(w_oihw):
    """One-time (model-load time) weight relayout: OIHW -> (KH*KW, Cout, Cin) bf16."""
    Cout, Cin, KH, KW = w_oihw.shape
    return (jnp.transpose(w_oihw, (2, 3, 0, 1))
            .reshape(KH * KW, Cout, Cin)
            .astype(jnp.bfloat16))


@jax.jit
def relu_conv2d(x_nchw, w_packed):
    """ReLU followed by Conv2d(3x3, stride 1, pad 1, bias=False).

    x_nchw:   (N, Cin, H, W) float32
    w_packed: (KH*KW, Cout, Cin) bfloat16 (from pack_weights)
    returns:  (N, Cout, H, W) float32
    """
    N, Cin, H, W = x_nchw.shape
    KK, Cout, _ = w_packed.shape
    HW = H * W

    # Free (contiguous) reshape: NCHW -> (N, Cin, H*W).
    x3 = x_nchw.reshape(N, Cin, HW)

    flops = 2 * N * HW * Cin * Cout * KK                  # ~3.6 MFLOP for this shape
    bytes_accessed = 4 * x3.size + 2 * w_packed.size + 4 * N * Cout * HW

    kernel = functools.partial(_relu_conv3x3_kernel, H=H, W=W)
    out = pl.pallas_call(
        kernel,
        out_shape=jax.ShapeDtypeStruct((N, Cout, HW), x_nchw.dtype),
        grid=(N,),
        in_specs=[
            pl.BlockSpec((None, Cin, HW), lambda n: (n, 0, 0)),
            pl.BlockSpec((KK, Cout, Cin), lambda n: (0, 0, 0)),
        ],
        out_specs=pl.BlockSpec((None, Cout, HW), lambda n: (n, 0, 0)),
        compiler_params=pltpu.CompilerParams(
            dimension_semantics=("parallel",)),
        cost_estimate=pl.CostEstimate(
            flops=flops, transcendentals=0, bytes_accessed=bytes_accessed),
    )(x3, w_packed)

    # Free (contiguous) reshape back to NCHW.
    return out.reshape(N, Cout, H, W)


if __name__ == "__main__":
    key = jax.random.PRNGKey(0)
    kx, kw = jax.random.split(key)

    # Shapes implied by the module's forward: x619 = [1, 128, 7, 7].
    N, Cin, H, W = 1, 128, 7, 7
    Cout, KH, KW = 32, 3, 3

    x = jax.random.normal(kx, (N, Cin, H, W), dtype=jnp.float32)
    fan_in = Cin * KH * KW
    w = jax.random.normal(kw, (Cout, Cin, KH, KW), dtype=jnp.float32) * (2.0 / fan_in) ** 0.5

    w_packed = pack_weights(w)                      # hoisted out of the per-call path
    out = jax.block_until_ready(relu_conv2d(x, w_packed))
    assert out.shape == (N, Cout, H, W)

    # Reference: full-precision XLA conv on the bf16-rounded operands.  The kernel's MXU
    # multiplies bf16 operands exactly and accumulates in f32, so operand rounding matches
    # and only accumulation order differs (tiny).
    x_bf = jnp.maximum(x, 0.0).astype(jnp.bfloat16).astype(jnp.float32)
    w_bf = w.astype(jnp.bfloat16).astype(jnp.float32)
    ref = jax.lax.conv_general_dilated(
        x_bf, w_bf,
        window_strides=(1, 1), padding=((1, 1), (1, 1)),
        dimension_numbers=("NCHW", "OIHW", "NCHW"),
        precision=jax.lax.Precision.HIGHEST)
    max_err = float(jnp.max(jnp.abs(out - ref)))
    assert jnp.allclose(out, ref, atol=1e-3, rtol=1e-3), max_err

    print("KERNEL_OK")
</pallas_src>

<mosaic_0001>
module attributes {stable_mosaic.version = 11 : i64} {
  func.func @_relu_conv3x3_kernel(%arg0: i32, %arg1: memref<1x128x49xf32, #tpu.memory_space<vmem>>, %arg2: memref<9x32x128xbf16, #tpu.memory_space<vmem>>, %arg3: memref<1x32x49xf32, #tpu.memory_space<vmem>>) attributes {dimension_semantics = [#tpu.dimension_semantics<parallel>], iteration_bounds = array<i64: 1>, scalar_prefetch = 0 : i64, scratch_operands = 0 : i64, tpu.core_type = #tpu.core_type<tc>, window_params = [{transform_indices = @transform_0, window_bounds = array<i64: 1, 128, 49>}, {pipeline_mode = #tpu.pipeline_mode<synchronous>, transform_indices = @transform_1, window_bounds = array<i64: 9, 32, 128>}, {transform_indices = @transform_2, window_bounds = array<i64: 1, 32, 49>}]} {
    %c0 = arith.constant 0 : index
    %c0_0 = arith.constant 0 : index
    %c0_1 = arith.constant 0 : index
    %0 = vector.load %arg1[%c0, %c0_0, %c0_1] : memref<1x128x49xf32, #tpu.memory_space<vmem>>, vector<1x128x49xf32>
    %1 = vector.shape_cast %0 : vector<1x128x49xf32> to vector<128x49xf32>
    %cst = arith.constant 0.000000e+00 : f32
    %2 = vector.broadcast %cst : f32 to vector<128x49xf32>
    %3 = arith.maximumf %1, %2 : vector<128x49xf32>
    %4 = arith.truncf %3 : vector<128x49xf32> to vector<128x49xbf16>
    %5 = tpu.iota {dimensions = array<i32: 1>} : vector<32x49xi32>
    %c0_i32 = arith.constant 0 : i32
    %6 = vector.broadcast %c0_i32 : i32 to vector<32x49xi32>
    %7 = arith.cmpi eq, %5, %6 : vector<32x49xi32>
    %c7_i32 = arith.constant 7 : i32
    %8 = vector.broadcast %c7_i32 : i32 to vector<32x49xi32>
    %9 = arith.cmpi eq, %5, %8 : vector<32x49xi32>
    %c14_i32 = arith.constant 14 : i32
    %10 = vector.broadcast %c14_i32 : i32 to vector<32x49xi32>
    %11 = arith.cmpi eq, %5, %10 : vector<32x49xi32>
    %c21_i32 = arith.constant 21 : i32
    %12 = vector.broadcast %c21_i32 : i32 to vector<32x49xi32>
    %13 = arith.cmpi eq, %5, %12 : vector<32x49xi32>
    %c28_i32 = arith.constant 28 : i32
    %14 = vector.broadcast %c28_i32 : i32 to vector<32x49xi32>
    %15 = arith.cmpi eq, %5, %14 : vector<32x49xi32>
    %c35_i32 = arith.constant 35 : i32
    %16 = vector.broadcast %c35_i32 : i32 to vector<32x49xi32>
    %17 = arith.cmpi eq, %5, %16 : vector<32x49xi32>
    %c42_i32 = arith.constant 42 : i32
    %18 = vector.broadcast %c42_i32 : i32 to vector<32x49xi32>
    %19 = arith.cmpi eq, %5, %18 : vector<32x49xi32>
    %20 = arith.ori %7, %9 : vector<32x49xi1>
    %21 = arith.ori %20, %11 : vector<32x49xi1>
    %22 = arith.ori %21, %13 : vector<32x49xi1>
    %23 = arith.ori %22, %15 : vector<32x49xi1>
    %24 = arith.ori %23, %17 : vector<32x49xi1>
    %25 = arith.ori %24, %19 : vector<32x49xi1>
    %c6_i32 = arith.constant 6 : i32
    %26 = vector.broadcast %c6_i32 : i32 to vector<32x49xi32>
    %27 = arith.cmpi eq, %5, %26 : vector<32x49xi32>
    %c13_i32 = arith.constant 13 : i32
    %28 = vector.broadcast %c13_i32 : i32 to vector<32x49xi32>
    %29 = arith.cmpi eq, %5, %28 : vector<32x49xi32>
    %c20_i32 = arith.constant 20 : i32
    %30 = vector.broadcast %c20_i32 : i32 to vector<32x49xi32>
    %31 = arith.cmpi eq, %5, %30 : vector<32x49xi32>
    %c27_i32 = arith.constant 27 : i32
    %32 = vector.broadcast %c27_i32 : i32 to vector<32x49xi32>
    %33 = arith.cmpi eq, %5, %32 : vector<32x49xi32>
    %c34_i32 = arith.constant 34 : i32
    %34 = vector.broadcast %c34_i32 : i32 to vector<32x49xi32>
    %35 = arith.cmpi eq, %5, %34 : vector<32x49xi32>
    %c41_i32 = arith.constant 41 : i32
    %36 = vector.broadcast %c41_i32 : i32 to vector<32x49xi32>
    %37 = arith.cmpi eq, %5, %36 : vector<32x49xi32>
    %c48_i32 = arith.constant 48 : i32
    %38 = vector.broadcast %c48_i32 : i32 to vector<32x49xi32>
    %39 = arith.cmpi eq, %5, %38 : vector<32x49xi32>
    %40 = arith.ori %27, %29 : vector<32x49xi1>
    %41 = arith.ori %40, %31 : vector<32x49xi1>
    %42 = arith.ori %41, %33 : vector<32x49xi1>
    %43 = arith.ori %42, %35 : vector<32x49xi1>
    %44 = arith.ori %43, %37 : vector<32x49xi1>
    %45 = arith.ori %44, %39 : vector<32x49xi1>
    %cst_2 = arith.constant dense<true> : vector<32x49xi1>
    %46 = arith.xori %25, %cst_2 : vector<32x49xi1>
    %cst_3 = arith.constant dense<true> : vector<32x49xi1>
    %47 = arith.xori %45, %cst_3 : vector<32x49xi1>
    %cst_4 = arith.constant 0.000000e+00 : f32
    %48 = vector.broadcast %cst_4 : f32 to vector<32x49xf32>
    %c0_5 = arith.constant 0 : index
    %c0_6 = arith.constant 0 : index
    %c0_7 = arith.constant 0 : index
    %49 = vector.load %arg2[%c0_5, %c0_6, %c0_7] : memref<9x32x128xbf16, #tpu.memory_space<vmem>>, vector<1x32x128xbf16>
    %50 = vector.shape_cast %49 : vector<1x32x128xbf16> to vector<32x128xbf16>
    %cst_8 = arith.constant dense<0.000000e+00> : vector<32x49xf32>
    %51 = tpu.matmul %50, %4, %cst_8 {dimension_numbers = #tpu.dot_dimension_numbers<[1], [0], [0], [1], [0, 0, 1, 1], [], []>} : vector<32x128xbf16>, vector<128x49xbf16>, vector<32x49xf32> -> vector<32x49xf32>
    %cst_9 = arith.constant 0.000000e+00 : f32
    %52 = vector.broadcast %cst_9 : f32 to vector<32x8xf32>
    %53 = vector.extract_strided_slice %51 {offsets = [0, 0], sizes = [32, 41], strides = [1, 1]} : vector<32x49xf32> to vector<32x41xf32>
    %54 = tpu.concatenate %52, %53 in 1 : vector<32x8xf32>, vector<32x41xf32> -> vector<32x49xf32>
    %cst_10 = arith.constant 0.000000e+00 : f32
    %55 = vector.broadcast %cst_10 : f32 to vector<32x49xf32>
    %56 = arith.select %46, %54, %55 : vector<32x49xi1>, vector<32x49xf32>
    %57 = arith.addf %48, %56 : vector<32x49xf32>
    %c1 = arith.constant 1 : index
    %c0_11 = arith.constant 0 : index
    %c0_12 = arith.constant 0 : index
    %58 = vector.load %arg2[%c1, %c0_11, %c0_12] : memref<9x32x128xbf16, #tpu.memory_space<vmem>>, vector<1x32x128xbf16>
    %59 = vector.shape_cast %58 : vector<1x32x128xbf16> to vector<32x128xbf16>
    %cst_13 = arith.constant dense<0.000000e+00> : vector<32x49xf32>
    %60 = tpu.matmul %59, %4, %cst_13 {dimension_numbers = #tpu.dot_dimension_numbers<[1], [0], [0], [1], [0, 0, 1, 1], [], []>} : vector<32x128xbf16>, vector<128x49xbf16>, vector<32x49xf32> -> vector<32x49xf32>
    %cst_14 = arith.constant 0.000000e+00 : f32
    %61 = vector.broadcast %cst_14 : f32 to vector<32x7xf32>
    %62 = vector.extract_strided_slice %60 {offsets = [0, 0], sizes = [32, 42], strides = [1, 1]} : vector<32x49xf32> to vector<32x42xf32>
    %63 = tpu.concatenate %61, %62 in 1 : vector<32x7xf32>, vector<32x42xf32> -> vector<32x49xf32>
    %64 = arith.addf %57, %63 : vector<32x49xf32>
    %c2 = arith.constant 2 : index
    %c0_15 = arith.constant 0 : index
    %c0_16 = arith.constant 0 : index
    %65 = vector.load %arg2[%c2, %c0_15, %c0_16] : memref<9x32x128xbf16, #tpu.memory_space<vmem>>, vector<1x32x128xbf16>
    %66 = vector.shape_cast %65 : vector<1x32x128xbf16> to vector<32x128xbf16>
    %cst_17 = arith.constant dense<0.000000e+00> : vector<32x49xf32>
    %67 = tpu.matmul %66, %4, %cst_17 {dimension_numbers = #tpu.dot_dimension_numbers<[1], [0], [0], [1], [0, 0, 1, 1], [], []>} : vector<32x128xbf16>, vector<128x49xbf16>, vector<32x49xf32> -> vector<32x49xf32>
    %cst_18 = arith.constant 0.000000e+00 : f32
    %68 = vector.broadcast %cst_18 : f32 to vector<32x6xf32>
    %69 = vector.extract_strided_slice %67 {offsets = [0, 0], sizes = [32, 43], strides = [1, 1]} : vector<32x49xf32> to vector<32x43xf32>
    %70 = tpu.concatenate %68, %69 in 1 : vector<32x6xf32>, vector<32x43xf32> -> vector<32x49xf32>
    %cst_19 = arith.constant 0.000000e+00 : f32
    %71 = vector.broadcast %cst_19 : f32 to vector<32x49xf32>
    %72 = arith.select %47, %70, %71 : vector<32x49xi1>, vector<32x49xf32>
    %73 = arith.addf %64, %72 : vector<32x49xf32>
    %c3 = arith.constant 3 : index
    %c0_20 = arith.constant 0 : index
    %c0_21 = arith.constant 0 : index
    %74 = vector.load %arg2[%c3, %c0_20, %c0_21] : memref<9x32x128xbf16, #tpu.memory_space<vmem>>, vector<1x32x128xbf16>
    %75 = vector.shape_cast %74 : vector<1x32x128xbf16> to vector<32x128xbf16>
    %cst_22 = arith.constant dense<0.000000e+00> : vector<32x49xf32>
    %76 = tpu.matmul %75, %4, %cst_22 {dimension_numbers = #tpu.dot_dimension_numbers<[1], [0], [0], [1], [0, 0, 1, 1], [], []>} : vector<32x128xbf16>, vector<128x49xbf16>, vector<32x49xf32> -> vector<32x49xf32>
    %cst_23 = arith.constant 0.000000e+00 : f32
    %77 = vector.broadcast %cst_23 : f32 to vector<32x1xf32>
    %78 = vector.extract_strided_slice %76 {offsets = [0, 0], sizes = [32, 48], strides = [1, 1]} : vector<32x49xf32> to vector<32x48xf32>
    %79 = tpu.concatenate %77, %78 in 1 : vector<32x1xf32>, vector<32x48xf32> -> vector<32x49xf32>
    %cst_24 = arith.constant 0.000000e+00 : f32
    %80 = vector.broadcast %cst_24 : f32 to vector<32x49xf32>
    %81 = arith.select %46, %79, %80 : vector<32x49xi1>, vector<32x49xf32>
    %82 = arith.addf %73, %81 : vector<32x49xf32>
    %c4 = arith.constant 4 : index
    %c0_25 = arith.constant 0 : index
    %c0_26 = arith.constant 0 : index
    %83 = vector.load %arg2[%c4, %c0_25, %c0_26] : memref<9x32x128xbf16, #tpu.memory_space<vmem>>, vector<1x32x128xbf16>
    %84 = vector.shape_cast %83 : vector<1x32x128xbf16> to vector<32x128xbf16>
    %cst_27 = arith.constant dense<0.000000e+00> : vector<32x49xf32>
    %85 = tpu.matmul %84, %4, %cst_27 {dimension_numbers = #tpu.dot_dimension_numbers<[1], [0], [0], [1], [0, 0, 1, 1], [], []>} : vector<32x128xbf16>, vector<128x49xbf16>, vector<32x49xf32> -> vector<32x49xf32>
    %86 = arith.addf %82, %85 : vector<32x49xf32>
    %c5 = arith.constant 5 : index
    %c0_28 = arith.constant 0 : index
    %c0_29 = arith.constant 0 : index
    %87 = vector.load %arg2[%c5, %c0_28, %c0_29] : memref<9x32x128xbf16, #tpu.memory_space<vmem>>, vector<1x32x128xbf16>
    %88 = vector.shape_cast %87 : vector<1x32x128xbf16> to vector<32x128xbf16>
    %cst_30 = arith.constant dense<0.000000e+00> : vector<32x49xf32>
    %89 = tpu.matmul %88, %4, %cst_30 {dimension_numbers = #tpu.dot_dimension_numbers<[1], [0], [0], [1], [0, 0, 1, 1], [], []>} : vector<32x128xbf16>, vector<128x49xbf16>, vector<32x49xf32> -> vector<32x49xf32>
    %90 = vector.extract_strided_slice %89 {offsets = [0, 1], sizes = [32, 48], strides = [1, 1]} : vector<32x49xf32> to vector<32x48xf32>
    %cst_31 = arith.constant 0.000000e+00 : f32
    %91 = vector.broadcast %cst_31 : f32 to vector<32x1xf32>
    %92 = tpu.concatenate %90, %91 in 1 : vector<32x48xf32>, vector<32x1xf32> -> vector<32x49xf32>
    %cst_32 = arith.constant 0.000000e+00 : f32
    %93 = vector.broadcast %cst_32 : f32 to vector<32x49xf32>
    %94 = arith.select %47, %92, %93 : vector<32x49xi1>, vector<32x49xf32>
    %95 = arith.addf %86, %94 : vector<32x49xf32>
    %c6 = arith.constant 6 : index
    %c0_33 = arith.constant 0 : index
    %c0_34 = arith.constant 0 : index
    %96 = vector.load %arg2[%c6, %c0_33, %c0_34] : memref<9x32x128xbf16, #tpu.memory_space<vmem>>, vector<1x32x128xbf16>
    %97 = vector.shape_cast %96 : vector<1x32x128xbf16> to vector<32x128xbf16>
    %cst_35 = arith.constant dense<0.000000e+00> : vector<32x49xf32>
    %98 = tpu.matmul %97, %4, %cst_35 {dimension_numbers = #tpu.dot_dimension_numbers<[1], [0], [0], [1], [0, 0, 1, 1], [], []>} : vector<32x128xbf16>, vector<128x49xbf16>, vector<32x49xf32> -> vector<32x49xf32>
    %99 = vector.extract_strided_slice %98 {offsets = [0, 6], sizes = [32, 43], strides = [1, 1]} : vector<32x49xf32> to vector<32x43xf32>
    %cst_36 = arith.constant 0.000000e+00 : f32
    %100 = vector.broadcast %cst_36 : f32 to vector<32x6xf32>
    %101 = tpu.concatenate %99, %100 in 1 : vector<32x43xf32>, vector<32x6xf32> -> vector<32x49xf32>
    %cst_37 = arith.constant 0.000000e+00 : f32
    %102 = vector.broadcast %cst_37 : f32 to vector<32x49xf32>
    %103 = arith.select %46, %101, %102 : vector<32x49xi1>, vector<32x49xf32>
    %104 = arith.addf %95, %103 : vector<32x49xf32>
    %c7 = arith.constant 7 : index
    %c0_38 = arith.constant 0 : index
    %c0_39 = arith.constant 0 : index
    %105 = vector.load %arg2[%c7, %c0_38, %c0_39] : memref<9x32x128xbf16, #tpu.memory_space<vmem>>, vector<1x32x128xbf16>
    %106 = vector.shape_cast %105 : vector<1x32x128xbf16> to vector<32x128xbf16>
    %cst_40 = arith.constant dense<0.000000e+00> : vector<32x49xf32>
    %107 = tpu.matmul %106, %4, %cst_40 {dimension_numbers = #tpu.dot_dimension_numbers<[1], [0], [0], [1], [0, 0, 1, 1], [], []>} : vector<32x128xbf16>, vector<128x49xbf16>, vector<32x49xf32> -> vector<32x49xf32>
    %108 = vector.extract_strided_slice %107 {offsets = [0, 7], sizes = [32, 42], strides = [1, 1]} : vector<32x49xf32> to vector<32x42xf32>
    %cst_41 = arith.constant 0.000000e+00 : f32
    %109 = vector.broadcast %cst_41 : f32 to vector<32x7xf32>
    %110 = tpu.concatenate %108, %109 in 1 : vector<32x42xf32>, vector<32x7xf32> -> vector<32x49xf32>
    %111 = arith.addf %104, %110 : vector<32x49xf32>
    %c8 = arith.constant 8 : index
    %c0_42 = arith.constant 0 : index
    %c0_43 = arith.constant 0 : index
    %112 = vector.load %arg2[%c8, %c0_42, %c0_43] : memref<9x32x128xbf16, #tpu.memory_space<vmem>>, vector<1x32x128xbf16>
    %113 = vector.shape_cast %112 : vector<1x32x128xbf16> to vector<32x128xbf16>
    %cst_44 = arith.constant dense<0.000000e+00> : vector<32x49xf32>
    %114 = tpu.matmul %113, %4, %cst_44 {dimension_numbers = #tpu.dot_dimension_numbers<[1], [0], [0], [1], [0, 0, 1, 1], [], []>} : vector<32x128xbf16>, vector<128x49xbf16>, vector<32x49xf32> -> vector<32x49xf32>
    %115 = vector.extract_strided_slice %114 {offsets = [0, 8], sizes = [32, 41], strides = [1, 1]} : vector<32x49xf32> to vector<32x41xf32>
    %cst_45 = arith.constant 0.000000e+00 : f32
    %116 = vector.broadcast %cst_45 : f32 to vector<32x8xf32>
    %117 = tpu.concatenate %115, %116 in 1 : vector<32x41xf32>, vector<32x8xf32> -> vector<32x49xf32>
    %cst_46 = arith.constant 0.000000e+00 : f32
    %118 = vector.broadcast %cst_46 : f32 to vector<32x49xf32>
    %119 = arith.select %47, %117, %118 : vector<32x49xi1>, vector<32x49xf32>
    %120 = arith.addf %111, %119 : vector<32x49xf32>
    %c0_47 = arith.constant 0 : index
    %c0_48 = arith.constant 0 : index
    %c0_49 = arith.constant 0 : index
    %121 = vector.load %arg3[%c0_47, %c0_48, %c0_49] : memref<1x32x49xf32, #tpu.memory_space<vmem>>, vector<1x32x49xf32>
    %122 = vector.shape_cast %121 : vector<1x32x49xf32> to vector<32x49xf32>
    %123 = vector.shape_cast %120 : vector<32x49xf32> to vector<1x32x49xf32>
    tpu.vector_store %arg3[%c0_47, %c0_48, %c0_49], %123 {strides = array<i32>} : memref<1x32x49xf32, #tpu.memory_space<vmem>>, vector<1x32x49xf32>,
    return
  }
  func.func @transform_0(%arg0: i32) -> (i32, i32, i32) {
    %c0_i32 = arith.constant 0 : i32
    %c0_i32_0 = arith.constant 0 : i32
    %c0_i32_1 = arith.constant 0 : i32
    return %arg0, %c0_i32, %c0_i32_0 : i32, i32, i32
  }
  func.func @transform_1(%arg0: i32) -> (i32, i32, i32) {
    %c0_i32 = arith.constant 0 : i32
    %c0_i32_0 = arith.constant 0 : i32
    %c0_i32_1 = arith.constant 0 : i32
    %c0_i32_2 = arith.constant 0 : i32
    return %c0_i32, %c0_i32_0, %c0_i32_1 : i32, i32, i32
  }
  func.func @transform_2(%arg0: i32) -> (i32, i32, i32) {
    %c0_i32 = arith.constant 0 : i32
    %c0_i32_0 = arith.constant 0 : i32
    %c0_i32_1 = arith.constant 0 : i32
    return %arg0, %c0_i32, %c0_i32_0 : i32, i32, i32
  }
}

</mosaic_0001>

<llo_original>
// kernel: relu_conv2d.1
$region0: #{relu_conv2d.1}
  #allocation0 [shape = 'u32[]', space=smem, size = 0x4, offset = 0x4, fixed_abs, tag = 'smem constant byte address 0x4 - core index']
  #allocation1 [shape = 'u32[144,128]{1,0:T(1,128)}', space=vmem, size = 0x12000, scoped, tag = 'internal scratch']
  %s0 = inlined_call_operand.vmem [shape: f32[1,128,49], index: 0, kind: input, shape index: {}]
  %s1 = inlined_call_operand.vmem [shape: bf16[9,32,128], index: 1, kind: input, shape index: {}]
  %s2 = inlined_call_operand.vmem [shape: f32[1,32,49], index: 2, kind: output, shape index: {}]
  %s3 = sld [smem:[#allocation0]]
  $region18: #{relu_conv2d.1} parent=0
    _
  %s5 = ssub.s32 1, %s3
  %s6 = scalar_select 0, %s5, %s3
  // Predicated region
  $region2: #{relu_conv2d.1} parent=0 // pred_check
    _
  $region3: #{relu_conv2d.1} parent=0 // pred_check_branch
    %8 = sbr.rel (0) target = $region5
  $region4: #{relu_conv2d.1} parent=0 // pred_region
    _
  $region5: #{relu_conv2d.1} parent=0 // pred_fallthru
    _
  // Predicated region
  $region6: #{relu_conv2d.1} parent=0 // pred_check
    _
  $region7: #{relu_conv2d.1} parent=0 // pred_check_branch
    %10 = sbr.rel (0) target = $region9
  $region8: #{relu_conv2d.1} parent=0 // pred_region
    _
  $region9: #{relu_conv2d.1} parent=0 // pred_fallthru
    _
  %v12 = vld [vmem:[%s0] sm:$0xff]
  %v13 = vld [vmem:[%s0 + $0x8] sm:$0xff]
  %v14 = vld [vmem:[%s0 + $0x10] sm:$0xff]
  %v15 = vld [vmem:[%s0 + $0x18] sm:$0xff]
  %v16 = vld [vmem:[%s0 + $0x20] sm:$0xff]
  %v17 = vld [vmem:[%s0 + $0x28] sm:$0xff]
  %v18 = vld [vmem:[%s0 + $0x30] sm:$0xff]
  %v19 = vld [vmem:[%s0 + $0x38] sm:$0xff]
  %v20 = vld [vmem:[%s0 + $0x40] sm:$0xff]
  %v21 = vld [vmem:[%s0 + $0x48] sm:$0xff]
  %v22 = vld [vmem:[%s0 + $0x50] sm:$0xff]
  %v23 = vld [vmem:[%s0 + $0x58] sm:$0xff]
  %v24 = vld [vmem:[%s0 + $0x60] sm:$0xff]
  %v25 = vld [vmem:[%s0 + $0x68] sm:$0xff]
  %v26 = vld [vmem:[%s0 + $0x70] sm:$0xff]
  %v27 = vld [vmem:[%s0 + $0x78] sm:$0xff]
  %v28 = vmax.f32 %v12, 0.0
  %v29 = vmax.f32 %v13, 0.0
  %v30 = vmax.f32 %v14, 0.0
  %v31 = vmax.f32 %v15, 0.0
  %v32 = vmax.f32 %v16, 0.0
  %v33 = vmax.f32 %v17, 0.0
  %v34 = vmax.f32 %v18, 0.0
  %v35 = vmax.f32 %v19, 0.0
  %v36 = vmax.f32 %v20, 0.0
  %v37 = vmax.f32 %v21, 0.0
  %v38 = vmax.f32 %v22, 0.0
  %v39 = vmax.f32 %v23, 0.0
  %v40 = vmax.f32 %v24, 0.0
  %v41 = vmax.f32 %v25, 0.0
  %v42 = vmax.f32 %v26, 0.0
  %v43 = vmax.f32 %v27, 0.0
  %v44 = vpack.c.bf16 %v29, %v28
  %v45 = vpack.c.bf16 %v31, %v30
  %v46 = vpack.c.bf16 %v33, %v32
  %v47 = vpack.c.bf16 %v35, %v34
  %v48 = vpack.c.bf16 %v37, %v36
  %v49 = vpack.c.bf16 %v39, %v38
  %v50 = vpack.c.bf16 %v41, %v40
  %v51 = vpack.c.bf16 %v43, %v42
  %v52 = vlaneseq
  %v53 = vand.u32 %v52, 127
  %vm54 = vcmp.eq.s32.totalorder %v53, 0
  %vm55 = vcmp.eq.s32.totalorder %v53, 7
  %vm56 = vcmp.eq.s32.totalorder %v53, 14
  %vm57 = vcmp.eq.s32.totalorder %v53, 21
  %vm58 = vcmp.eq.s32.totalorder %v53, 28
  %vm59 = vcmp.eq.s32.totalorder %v53, 35
  %vm60 = vcmp.eq.s32.totalorder %v53, 42
  %vm61 = vmor %vm54, %vm55
  %vm62 = vmor %vm61, %vm56
  %vm63 = vmor %vm62, %vm57
  %vm64 = vmor %vm63, %vm58
  %vm65 = vmor %vm64, %vm59
  %vm66 = vmor %vm65, %vm60
  %vm67 = vcmp.eq.s32.totalorder %v53, 6
  %vm68 = vcmp.eq.s32.totalorder %v53, 13
  %vm69 = vcmp.eq.s32.totalorder %v53, 20
  %vm70 = vcmp.eq.s32.totalorder %v53, 27
  %vm71 = vcmp.eq.s32.totalorder %v53, 34
  %vm72 = vcmp.eq.s32.totalorder %v53, 41
  %vm73 = vcmp.eq.s32.totalorder %v53, 48
  %vm74 = vmor %vm67, %vm68
  %vm75 = vmor %vm74, %vm69
  %vm76 = vmor %vm75, %vm70
  %vm77 = vmor %vm76, %vm71
  %vm78 = vmor %vm77, %vm72
  %vm79 = vmor %vm78, %vm73
  %vm80 = vmxor %vm66, 1
  %vm81 = vmxor %vm79, 1
  %v82 = vld [vmem:[%s1] sm:$0xf]
  %v83 = vld [vmem:[%s1 + $0x4] sm:$0xf]
  %v84 = vld [vmem:[%s1 + $0x8] sm:$0xf]
  %v85 = vld [vmem:[%s1 + $0xc] sm:$0xf]
  %v90 = vunpack.c.l.b16 %v82
  %v91 = vunpack.c.l.b16 %v83
  %v92 = vunpack.c.l.b16 %v84
  %v93 = vunpack.c.l.b16 %v85
  %v94 = vpack.c.b16 %v91, %v90
  %v95 = vpack.c.b16 %v93, %v92
  %98 = vmatprep.subr.bf16.mxu0 0
  %99 = vmatpush1.bf16.msra.mxu0 %v44
  %100 = vmatprep.subr.bf16.mxu0 0
  %101 = vmatpush1.bf16.msra.mxu0 %v45
  %102 = vmatprep.subr.bf16.mxu0 0
  %103 = vmatpush1.bf16.msra.mxu0 %v46
  %104 = vmatprep.subr.bf16.mxu0 0
  %105 = vmatpush1.bf16.msra.mxu0 %v47
  %106 = vmatprep.subr.bf16.mxu0 0
  %107 = vmatpush1.bf16.msra.mxu0 %v48
  %108 = vmatprep.subr.bf16.mxu0 0
  %109 = vmatpush1.bf16.msra.mxu0 %v49
  %110 = vmatprep.subr.bf16.mxu0 0
  %111 = vmatpush1.bf16.msra.mxu0 %v50
  %112 = vmatprep.subr.bf16.mxu0 0
  %113 = vmatpush1.bf16.msra.mxu0 %v51
  %114 = vmatprep.subr.bf16.mxu0 0
  %115 = vmatpush1.bf16.msra.mxu0 0
  %116 = vmatprep.subr.bf16.mxu0 0
  %117 = vmatpush1.bf16.msra.mxu0 0
  %118 = vmatprep.subr.bf16.mxu0 0
  %119 = vmatpush1.bf16.msra.mxu0 0
  %120 = vmatprep.subr.bf16.mxu0 0
  %121 = vmatpush1.bf16.msra.mxu0 0
  %122 = vmatprep.subr.bf16.mxu0 0
  %123 = vmatpush1.bf16.msra.mxu0 0
  %124 = vmatprep.subr.bf16.mxu0 0
  %125 = vmatpush1.bf16.msra.mxu0 0
  %126 = vmatprep.subr.bf16.mxu0 0
  %127 = vmatpush1.bf16.msra.mxu0 0
  %128 = vmatprep.subr.bf16.mxu0 0
  %129 = vmatpush1.bf16.msra.mxu0 0
  %130 = vmatprep.mubr.bf16.mxu0 0
  %131 = vmatmul.mubr.bf16.gmra.mrb[0].mxu0 %v94
  %v132 = vpop.f32.mrb[0].mxu0
  %v133 = vadd.f32 0.0, %v132
  %v134 = vpop.f32.mrb[0].mxu0
  %v135 = vpop.f32.mrb[0].mxu0
  %v136 = vadd.f32 0.0, %v135
  %v137 = vpop.f32.mrb[0].mxu0
  %138 = vmatprep.mubr.bf16.mxu0 0
  %139 = vmatmul.mubr.bf16.gmra.mrb[0].mxu0 %v95
  %v140 = vpop.f32.mrb[0].mxu0
  %v141 = vadd.f32 0.0, %v140
  %v142 = vpop.f32.mrb[0].mxu0
  %v143 = vpop.f32.mrb[0].mxu0
  %v144 = vadd.f32 0.0, %v143
  %v145 = vpop.f32.mrb[0].mxu0
  %146 = vdwg.mxu0
  %151 = vrot.lane.b32.xlu0 %v133, 8
  %v152 = vpop.permute.xlu0 %151
  %153 = vrot.lane.b32.xlu0 %v136, 8
  %v154 = vpop.permute.xlu0 %153
  %155 = vrot.lane.b32.xlu0 %v141, 8
  %v156 = vpop.permute.xlu0 %155
  %157 = vrot.lane.b32.xlu0 %v144, 8
  %v158 = vpop.permute.xlu0 %157
  %vm163 = vcmask 64512
  %v164 = vsel %vm163, 0.0, %v152
  %v165 = vsel %vm163, 0.0, %v154
  %v166 = vsel %vm163, 0.0, %v156
  %v167 = vsel %vm163, 0.0, %v158
  %v168 = vsel %vm80, %v164, 0.0
  %v169 = vsel %vm80, %v165, 0.0
  %v170 = vsel %vm80, %v166, 0.0
  %v171 = vsel %vm80, %v167, 0.0
  %v172 = vadd.f32 %v168, 0.0
  %v173 = vadd.f32 %v169, 0.0
  %v174 = vadd.f32 %v170, 0.0
  %v175 = vadd.f32 %v171, 0.0
  %s176 = scalar_lea.vmem %s1, 16
  %v177 = vld [vmem:[%s176] sm:$0xf]
  %v178 = vld [vmem:[%s176 + $0x4] sm:$0xf]
  %v179 = vld [vmem:[%s176 + $0x8] sm:$0xf]
  %v180 = vld [vmem:[%s176 + $0xc] sm:$0xf]
  %v185 = vunpack.c.l.b16 %v177
  %v186 = vunpack.c.l.b16 %v178
  %v187 = vunpack.c.l.b16 %v179
  %v188 = vunpack.c.l.b16 %v180
  %v189 = vpack.c.b16 %v186, %v185
  %v190 = vpack.c.b16 %v188, %v187
  %193 = vmatprep.subr.bf16.mxu0 0
  %194 = vmatpush1.bf16.msra.mxu0 %v44
  %195 = vmatprep.subr.bf16.mxu0 0
  %196 = vmatpush1.bf16.msra.mxu0 %v45
  %197 = vmatprep.subr.bf16.mxu0 0
  %198 = vmatpush1.bf16.msra.mxu0 %v46
  %199 = vmatprep.subr.bf16.mxu0 0
  %200 = vmatpush1.bf16.msra.mxu0 %v47
  %201 = vmatprep.subr.bf16.mxu0 0
  %202 = vmatpush1.bf16.msra.mxu0 %v48
  %203 = vmatprep.subr.bf16.mxu0 0
  %204 = vmatpush1.bf16.msra.mxu0 %v49
  %205 = vmatprep.subr.bf16.mxu0 0
  %206 = vmatpush1.bf16.msra.mxu0 %v50
  %207 = vmatprep.subr.bf16.mxu0 0
  %208 = vmatpush1.bf16.msra.mxu0 %v51
  %209 = vmatprep.subr.bf16.mxu0 0
  %210 = vmatpush1.bf16.msra.mxu0 0
  %211 = vmatprep.subr.bf16.mxu0 0
  %212 = vmatpush1.bf16.msra.mxu0 0
  %213 = vmatprep.subr.bf16.mxu0 0
  %214 = vmatpush1.bf16.msra.mxu0 0
  %215 = vmatprep.subr.bf16.mxu0 0
  %216 = vmatpush1.bf16.msra.mxu0 0
  %217 = vmatprep.subr.bf16.mxu0 0
  %218 = vmatpush1.bf16.msra.mxu0 0
  %219 = vmatprep.subr.bf16.mxu0 0
  %220 = vmatpush1.bf16.msra.mxu0 0
  %221 = vmatprep.subr.bf16.mxu0 0
  %222 = vmatpush1.bf16.msra.mxu0 0
  %223 = vmatprep.subr.bf16.mxu0 0
  %224 = vmatpush1.bf16.msra.mxu0 0
  %225 = vmatprep.mubr.bf16.mxu0 0
  %226 = vmatmul.mubr.bf16.gmra.mrb[0].mxu0 %v189
  %v227 = vpop.f32.mrb[0].mxu0
  %v228 = vadd.f32 0.0, %v227
  %v229 = vpop.f32.mrb[0].mxu0
  %v230 = vpop.f32.mrb[0].mxu0
  %v231 = vadd.f32 0.0, %v230
  %v232 = vpop.f32.mrb[0].mxu0
  %233 = vmatprep.mubr.bf16.mxu0 0
  %234 = vmatmul.mubr.bf16.gmra.mrb[0].mxu0 %v190
  %v235 = vpop.f32.mrb[0].mxu0
  %v236 = vadd.f32 0.0, %v235
  %v237 = vpop.f32.mrb[0].mxu0
  %v238 = vpop.f32.mrb[0].mxu0
  %v239 = vadd.f32 0.0, %v238
  %v240 = vpop.f32.mrb[0].mxu0
  %241 = vdwg.mxu0
  %246 = vrot.lane.b32.xlu0 %v228, 7
  %v247 = vpop.permute.xlu0 %246
  %248 = vrot.lane.b32.xlu0 %v231, 7
  %v249 = vpop.permute.xlu0 %248
  %250 = vrot.lane.b32.xlu0 %v236, 7
  %v251 = vpop.permute.xlu0 %250
  %252 = vrot.lane.b32.xlu0 %v239, 7
  %v253 = vpop.permute.xlu0 %252
  %vm258 = vcmask 56320
  %v259 = vsel %vm258, 0.0, %v247
  %v260 = vsel %vm258, 0.0, %v249
  %v261 = vsel %vm258, 0.0, %v251
  %v262 = vsel %vm258, 0.0, %v253
  %v263 = vadd.f32 %v172, %v259
  %v264 = vadd.f32 %v173, %v260
  %v265 = vadd.f32 %v174, %v261
  %v266 = vadd.f32 %v175, %v262
  %s267 = scalar_lea.vmem %s1, 32
  %v268 = vld [vmem:[%s267] sm:$0xf]
  %v269 = vld [vmem:[%s267 + $0x4] sm:$0xf]
  %v270 = vld [vmem:[%s267 + $0x8] sm:$0xf]
  %v271 = vld [vmem:[%s267 + $0xc] sm:$0xf]
  %v276 = vunpack.c.l.b16 %v268
  %v277 = vunpack.c.l.b16 %v269
  %v278 = vunpack.c.l.b16 %v270
  %v279 = vunpack.c.l.b16 %v271
  %v280 = vpack.c.b16 %v277, %v276
  %v281 = vpack.c.b16 %v279, %v278
  %284 = vmatprep.subr.bf16.mxu0 0
  %285 = vmatpush1.bf16.msra.mxu0 %v44
  %286 = vmatprep.subr.bf16.mxu0 0
  %287 = vmatpush1.bf16.msra.mxu0 %v45
  %288 = vmatprep.subr.bf16.mxu0 0
  %289 = vmatpush1.bf16.msra.mxu0 %v46
  %290 = vmatprep.subr.bf16.mxu0 0
  %291 = vmatpush1.bf16.msra.mxu0 %v47
  %292 = vmatprep.subr.bf16.mxu0 0
  %293 = vmatpush1.bf16.msra.mxu0 %v48
  %294 = vmatprep.subr.bf16.mxu0 0
  %295 = vmatpush1.bf16.msra.mxu0 %v49
  %296 = vmatprep.subr.bf16.mxu0 0
  %297 = vmatpush1.bf16.msra.mxu0 %v50
  %298 = vmatprep.subr.bf16.mxu0 0
  %299 = vmatpush1.bf16.msra.mxu0 %v51
  %300 = vmatprep.subr.bf16.mxu0 0
  %301 = vmatpush1.bf16.msra.mxu0 0
  %302 = vmatprep.subr.bf16.mxu0 0
  %303 = vmatpush1.bf16.msra.mxu0 0
  %304 = vmatprep.subr.bf16.mxu0 0
  %305 = vmatpush1.bf16.msra.mxu0 0
  %306 = vmatprep.subr.bf16.mxu0 0
  %307 = vmatpush1.bf16.msra.mxu0 0
  %308 = vmatprep.subr.bf16.mxu0 0
  %309 = vmatpush1.bf16.msra.mxu0 0
  %310 = vmatprep.subr.bf16.mxu0 0
  %311 = vmatpush1.bf16.msra.mxu0 0
  %312 = vmatprep.subr.bf16.mxu0 0
  %313 = vmatpush1.bf16.msra.mxu0 0
  %314 = vmatprep.subr.bf16.mxu0 0
  %315 = vmatpush1.bf16.msra.mxu0 0
  %316 = vmatprep.mubr.bf16.mxu0 0
  %317 = vmatmul.mubr.bf16.gmra.mrb[0].mxu0 %v280
  %v318 = vpop.f32.mrb[0].mxu0
  %v319 = vadd.f32 0.0, %v318
  %v320 = vpop.f32.mrb[0].mxu0
  %v321 = vpop.f32.mrb[0].mxu0
  %v322 = vadd.f32 0.0, %v321
  %v323 = vpop.f32.mrb[0].mxu0
  %324 = vmatprep.mubr.bf16.mxu0 0
  %325 = vmatmul.mubr.bf16.gmra.mrb[0].mxu0 %v281
  %v326 = vpop.f32.mrb[0].mxu0
  %v327 = vadd.f32 0.0, %v326
  %v328 = vpop.f32.mrb[0].mxu0
  %v329 = vpop.f32.mrb[0].mxu0
  %v330 = vadd.f32 0.0, %v329
  %v331 = vpop.f32.mrb[0].mxu0
  %332 = vdwg.mxu0
  %337 = vrot.lane.b32.xlu0 %v319, 6
  %v338 = vpop.permute.xlu0 %337
  %339 = vrot.lane.b32.xlu0 %v322, 6
  %v340 = vpop.permute.xlu0 %339
  %341 = vrot.lane.b32.xlu0 %v327, 6
  %v342 = vpop.permute.xlu0 %341
  %343 = vrot.lane.b32.xlu0 %v330, 6
  %v344 = vpop.permute.xlu0 %343
  %vm349 = vcmask 48128
  %v350 = vsel %vm349, 0.0, %v338
  %v351 = vsel %vm349, 0.0, %v340
  %v352 = vsel %vm349, 0.0, %v342
  %v353 = vsel %vm349, 0.0, %v344
  %v354 = vsel %vm81, %v350, 0.0
  %v355 = vsel %vm81, %v351, 0.0
  %v356 = vsel %vm81, %v352, 0.0
  %v357 = vsel %vm81, %v353, 0.0
  %v358 = vadd.f32 %v263, %v354
  %v359 = vadd.f32 %v264, %v355
  %v360 = vadd.f32 %v265, %v356
  %v361 = vadd.f32 %v266, %v357
  %s362 = scalar_lea.vmem %s1, 48
  %v363 = vld [vmem:[%s362] sm:$0xf]
  %v364 = vld [vmem:[%s362 + $0x4] sm:$0xf]
  %v365 = vld [vmem:[%s362 + $0x8] sm:$0xf]
  %v366 = vld [vmem:[%s362 + $0xc] sm:$0xf]
  %v371 = vunpack.c.l.b16 %v363
  %v372 = vunpack.c.l.b16 %v364
  %v373 = vunpack.c.l.b16 %v365
  %v374 = vunpack.c.l.b16 %v366
  %v375 = vpack.c.b16 %v372, %v371
  %v376 = vpack.c.b16 %v374, %v373
  %379 = vmatprep.subr.bf16.mxu0 0
  %380 = vmatpush1.bf16.msra.mxu0 %v44
  %381 = vmatprep.subr.bf16.mxu0 0
  %382 = vmatpush1.bf16.msra.mxu0 %v45
  %383 = vmatprep.subr.bf16.mxu0 0
  %384 = vmatpush1.bf16.msra.mxu0 %v46
  %385 = vmatprep.subr.bf16.mxu0 0
  %386 = vmatpush1.bf16.msra.mxu0 %v47
  %387 = vmatprep.subr.bf16.mxu0 0
  %388 = vmatpush1.bf16.msra.mxu0 %v48
  %389 = vmatprep.subr.bf16.mxu0 0
  %390 = vmatpush1.bf16.msra.mxu0 %v49
  %391 = vmatprep.subr.bf16.mxu0 0
  %392 = vmatpush1.bf16.msra.mxu0 %v50
  %393 = vmatprep.subr.bf16.mxu0 0
  %394 = vmatpush1.bf16.msra.mxu0 %v51
  %395 = vmatprep.subr.bf16.mxu0 0
  %396 = vmatpush1.bf16.msra.mxu0 0
  %397 = vmatprep.subr.bf16.mxu0 0
  %398 = vmatpush1.bf16.msra.mxu0 0
  %399 = vmatprep.subr.bf16.mxu0 0
  %400 = vmatpush1.bf16.msra.mxu0 0
  %401 = vmatprep.subr.bf16.mxu0 0
  %402 = vmatpush1.bf16.msra.mxu0 0
  %403 = vmatprep.subr.bf16.mxu0 0
  %404 = vmatpush1.bf16.msra.mxu0 0
  %405 = vmatprep.subr.bf16.mxu0 0
  %406 = vmatpush1.bf16.msra.mxu0 0
  %407 = vmatprep.subr.bf16.mxu0 0
  %408 = vmatpush1.bf16.msra.mxu0 0
  %409 = vmatprep.subr.bf16.mxu0 0
  %410 = vmatpush1.bf16.msra.mxu0 0
  %411 = vmatprep.mubr.bf16.mxu0 0
  %412 = vmatmul.mubr.bf16.gmra.mrb[0].mxu0 %v375
  %v413 = vpop.f32.mrb[0].mxu0
  %v414 = vadd.f32 0.0, %v413
  %v415 = vpop.f32.mrb[0].mxu0
  %v416 = vpop.f32.mrb[0].mxu0
  %v417 = vadd.f32 0.0, %v416
  %v418 = vpop.f32.mrb[0].mxu0
  %419 = vmatprep.mubr.bf16.mxu0 0
  %420 = vmatmul.mubr.bf16.gmra.mrb[0].mxu0 %v376
  %v421 = vpop.f32.mrb[0].mxu0
  %v422 = vadd.f32 0.0, %v421
  %v423 = vpop.f32.mrb[0].mxu0
  %v424 = vpop.f32.mrb[0].mxu0
  %v425 = vadd.f32 0.0, %v424
  %v426 = vpop.f32.mrb[0].mxu0
  %427 = vdwg.mxu0
  %432 = vrot.lane.b32.xlu0 %v414, 1
  %v433 = vpop.permute.xlu0 %432
  %434 = vrot.lane.b32.xlu0 %v417, 1
  %v435 = vpop.permute.xlu0 %434
  %436 = vrot.lane.b32.xlu0 %v422, 1
  %v437 = vpop.permute.xlu0 %436
  %438 = vrot.lane.b32.xlu0 %v425, 1
  %v439 = vpop.permute.xlu0 %438
  %vm444 = vcmask 7168
  %v445 = vsel %vm444, 0.0, %v433
  %v446 = vsel %vm444, 0.0, %v435
  %v447 = vsel %vm444, 0.0, %v437
  %v448 = vsel %vm444, 0.0, %v439
  %v449 = vsel %vm80, %v445, 0.0
  %v450 = vsel %vm80, %v446, 0.0
  %v451 = vsel %vm80, %v447, 0.0
  %v452 = vsel %vm80, %v448, 0.0
  %v453 = vadd.f32 %v358, %v449
  %v454 = vadd.f32 %v359, %v450
  %v455 = vadd.f32 %v360, %v451
  %v456 = vadd.f32 %v361, %v452
  %s457 = scalar_lea.vmem %s1, 64
  %v458 = vld [vmem:[%s457] sm:$0xf]
  %v459 = vld [vmem:[%s457 + $0x4] sm:$0xf]
  %v460 = vld [vmem:[%s457 + $0x8] sm:$0xf]
  %v461 = vld [vmem:[%s457 + $0xc] sm:$0xf]
  %v466 = vunpack.c.l.b16 %v458
  %v467 = vunpack.c.l.b16 %v459
  %v468 = vunpack.c.l.b16 %v460
  %v469 = vunpack.c.l.b16 %v461
  %v470 = vpack.c.b16 %v467, %v466
  %v471 = vpack.c.b16 %v469, %v468
  %474 = vmatprep.subr.bf16.mxu0 0
  %475 = vmatpush1.bf16.msra.mxu0 %v44
  %476 = vmatprep.subr.bf16.mxu0 0
  %477 = vmatpush1.bf16.msra.mxu0 %v45
  %478 = vmatprep.subr.bf16.mxu0 0
  %479 = vmatpush1.bf16.msra.mxu0 %v46
  %480 = vmatprep.subr.bf16.mxu0 0
  %481 = vmatpush1.bf16.msra.mxu0 %v47
  %482 = vmatprep.subr.bf16.mxu0 0
  %483 = vmatpush1.bf16.msra.mxu0 %v48
  %484 = vmatprep.subr.bf16.mxu0 0
  %485 = vmatpush1.bf16.msra.mxu0 %v49
  %486 = vmatprep.subr.bf16.mxu0 0
  %487 = vmatpush1.bf16.msra.mxu0 %v50
  %488 = vmatprep.subr.bf16.mxu0 0
  %489 = vmatpush1.bf16.msra.mxu0 %v51
  %490 = vmatprep.subr.bf16.mxu0 0
  %491 = vmatpush1.bf16.msra.mxu0 0
  %492 = vmatprep.subr.bf16.mxu0 0
  %493 = vmatpush1.bf16.msra.mxu0 0
  %494 = vmatprep.subr.bf16.mxu0 0
  %495 = vmatpush1.bf16.msra.mxu0 0
  %496 = vmatprep.subr.bf16.mxu0 0
  %497 = vmatpush1.bf16.msra.mxu0 0
  %498 = vmatprep.subr.bf16.mxu0 0
  %499 = vmatpush1.bf16.msra.mxu0 0
  %500 = vmatprep.subr.bf16.mxu0 0
  %501 = vmatpush1.bf16.msra.mxu0 0
  %502 = vmatprep.subr.bf16.mxu0 0
  %503 = vmatpush1.bf16.msra.mxu0 0
  %504 = vmatprep.subr.bf16.mxu0 0
  %505 = vmatpush1.bf16.msra.mxu0 0
  %506 = vmatprep.mubr.bf16.mxu0 0
  %507 = vmatmul.mubr.bf16.gmra.mrb[0].mxu0 %v470
  %v508 = vpop.f32.mrb[0].mxu0
  %v509 = vadd.f32 0.0, %v508
  %v510 = vpop.f32.mrb[0].mxu0
  %v511 = vpop.f32.mrb[0].mxu0
  %v512 = vadd.f32 0.0, %v511
  %v513 = vpop.f32.mrb[0].mxu0
  %514 = vmatprep.mubr.bf16.mxu0 0
  %515 = vmatmul.mubr.bf16.gmra.mrb[0].mxu0 %v471
  %v516 = vpop.f32.mrb[0].mxu0
  %v517 = vadd.f32 0.0, %v516
  %v518 = vpop.f32.mrb[0].mxu0
  %v519 = vpop.f32.mrb[0].mxu0
  %v520 = vadd.f32 0.0, %v519
  %v521 = vpop.f32.mrb[0].mxu0
  %522 = vdwg.mxu0
  %v523 = vadd.f32 %v453, %v509
  %v524 = vadd.f32 %v454, %v512
  %v525 = vadd.f32 %v455, %v517
  %v526 = vadd.f32 %v456, %v520
  %s527 = scalar_lea.vmem %s1, 80
  %v528 = vld [vmem:[%s527] sm:$0xf]
  %v529 = vld [vmem:[%s527 + $0x4] sm:$0xf]
  %v530 = vld [vmem:[%s527 + $0x8] sm:$0xf]
  %v531 = vld [vmem:[%s527 + $0xc] sm:$0xf]
  %v536 = vunpack.c.l.b16 %v528
  %v537 = vunpack.c.l.b16 %v529
  %v538 = vunpack.c.l.b16 %v530
  %v539 = vunpack.c.l.b16 %v531
  %v540 = vpack.c.b16 %v537, %v536
  %v541 = vpack.c.b16 %v539, %v538
  %544 = vmatprep.subr.bf16.mxu0 0
  %545 = vmatpush1.bf16.msra.mxu0 %v44
  %546 = vmatprep.subr.bf16.mxu0 0
  %547 = vmatpush1.bf16.msra.mxu0 %v45
  %548 = vmatprep.subr.bf16.mxu0 0
  %549 = vmatpush1.bf16.msra.mxu0 %v46
  %550 = vmatprep.subr.bf16.mxu0 0
  %551 = vmatpush1.bf16.msra.mxu0 %v47
  %552 = vmatprep.subr.bf16.mxu0 0
  %553 = vmatpush1.bf16.msra.mxu0 %v48
  %554 = vmatprep.subr.bf16.mxu0 0
  %555 = vmatpush1.bf16.msra.mxu0 %v49
  %556 = vmatprep.subr.bf16.mxu0 0
  %557 = vmatpush1.bf16.msra.mxu0 %v50
  %558 = vmatprep.subr.bf16.mxu0 0
  %559 = vmatpush1.bf16.msra.mxu0 %v51
  %560 = vmatprep.subr.bf16.mxu0 0
  %561 = vmatpush1.bf16.msra.mxu0 0
  %562 = vmatprep.subr.bf16.mxu0 0
  %563 = vmatpush1.bf16.msra.mxu0 0
  %564 = vmatprep.subr.bf16.mxu0 0
  %565 = vmatpush1.bf16.msra.mxu0 0
  %566 = vmatprep.subr.bf16.mxu0 0
  %567 = vmatpush1.bf16.msra.mxu0 0
  %568 = vmatprep.subr.bf16.mxu0 0
  %569 = vmatpush1.bf16.msra.mxu0 0
  %570 = vmatprep.subr.bf16.mxu0 0
  %571 = vmatpush1.bf16.msra.mxu0 0
  %572 = vmatprep.subr.bf16.mxu0 0
  %573 = vmatpush1.bf16.msra.mxu0 0
  %574 = vmatprep.subr.bf16.mxu0 0
  %575 = vmatpush1.bf16.msra.mxu0 0
  %576 = vmatprep.mubr.bf16.mxu0 0
  %577 = vmatmul.mubr.bf16.gmra.mrb[0].mxu0 %v540
  %v578 = vpop.f32.mrb[0].mxu0
  %v579 = vadd.f32 0.0, %v578
  %v580 = vpop.f32.mrb[0].mxu0
  %v581 = vpop.f32.mrb[0].mxu0
  %v582 = vadd.f32 0.0, %v581
  %v583 = vpop.f32.mrb[0].mxu0
  %584 = vmatprep.mubr.bf16.mxu0 0
  %585 = vmatmul.mubr.bf16.gmra.mrb[0].mxu0 %v541
  %v586 = vpop.f32.mrb[0].mxu0
  %v587 = vadd.f32 0.0, %v586
  %v588 = vpop.f32.mrb[0].mxu0
  %v589 = vpop.f32.mrb[0].mxu0
  %v590 = vadd.f32 0.0, %v589
  %v591 = vpop.f32.mrb[0].mxu0
  %592 = vdwg.mxu0
  %597 = vrot.lane.b32.xlu0 %v579, 127
  %v598 = vpop.permute.xlu0 %597
  %599 = vrot.lane.b32.xlu0 %v582, 127
  %v600 = vpop.permute.xlu0 %599
  %601 = vrot.lane.b32.xlu0 %v587, 127
  %v602 = vpop.permute.xlu0 %601
  %603 = vrot.lane.b32.xlu0 %v590, 127
  %v604 = vpop.permute.xlu0 %603
  %vm609 = vcmask 392192
  %v610 = vsel %vm609, %v598, 0.0
  %v611 = vsel %vm609, %v600, 0.0
  %v612 = vsel %vm609, %v602, 0.0
  %v613 = vsel %vm609, %v604, 0.0
  %v614 = vsel %vm81, %v610, 0.0
  %v615 = vsel %vm81, %v611, 0.0
  %v616 = vsel %vm81, %v612, 0.0
  %v617 = vsel %vm81, %v613, 0.0
  %v618 = vadd.f32 %v523, %v614
  %v619 = vadd.f32 %v524, %v615
  %v620 = vadd.f32 %v525, %v616
  %v621 = vadd.f32 %v526, %v617
  %s622 = scalar_lea.vmem %s1, 96
  %v623 = vld [vmem:[%s622] sm:$0xf]
  %v624 = vld [vmem:[%s622 + $0x4] sm:$0xf]
  %v625 = vld [vmem:[%s622 + $0x8] sm:$0xf]
  %v626 = vld [vmem:[%s622 + $0xc] sm:$0xf]
  %v631 = vunpack.c.l.b16 %v623
  %v632 = vunpack.c.l.b16 %v624
  %v633 = vunpack.c.l.b16 %v625
  %v634 = vunpack.c.l.b16 %v626
  %v635 = vpack.c.b16 %v632, %v631
  %v636 = vpack.c.b16 %v634, %v633
  %639 = vmatprep.subr.bf16.mxu0 0
  %640 = vmatpush1.bf16.msra.mxu0 %v44
  %641 = vmatprep.subr.bf16.mxu0 0
  %642 = vmatpush1.bf16.msra.mxu0 %v45
  %643 = vmatprep.subr.bf16.mxu0 0
  %644 = vmatpush1.bf16.msra.mxu0 %v46
  %645 = vmatprep.subr.bf16.mxu0 0
  %646 = vmatpush1.bf16.msra.mxu0 %v47
  %647 = vmatprep.subr.bf16.mxu0 0
  %648 = vmatpush1.bf16.msra.mxu0 %v48
  %649 = vmatprep.subr.bf16.mxu0 0
  %650 = vmatpush1.bf16.msra.mxu0 %v49
  %651 = vmatprep.subr.bf16.mxu0 0
  %652 = vmatpush1.bf16.msra.mxu0 %v50
  %653 = vmatprep.subr.bf16.mxu0 0
  %654 = vmatpush1.bf16.msra.mxu0 %v51
  %655 = vmatprep.subr.bf16.mxu0 0
  %656 = vmatpush1.bf16.msra.mxu0 0
  %657 = vmatprep.subr.bf16.mxu0 0
  %658 = vmatpush1.bf16.msra.mxu0 0
  %659 = vmatprep.subr.bf16.mxu0 0
  %660 = vmatpush1.bf16.msra.mxu0 0
  %661 = vmatprep.subr.bf16.mxu0 0
  %662 = vmatpush1.bf16.msra.mxu0 0
  %663 = vmatprep.subr.bf16.mxu0 0
  %664 = vmatpush1.bf16.msra.mxu0 0
  %665 = vmatprep.subr.bf16.mxu0 0
  %666 = vmatpush1.bf16.msra.mxu0 0
  %667 = vmatprep.subr.bf16.mxu0 0
  %668 = vmatpush1.bf16.msra.mxu0 0
  %669 = vmatprep.subr.bf16.mxu0 0
  %670 = vmatpush1.bf16.msra.mxu0 0
  %671 = vmatprep.mubr.bf16.mxu0 0
  %672 = vmatmul.mubr.bf16.gmra.mrb[0].mxu0 %v635
  %v673 = vpop.f32.mrb[0].mxu0
  %v674 = vadd.f32 0.0, %v673
  %v675 = vpop.f32.mrb[0].mxu0
  %v676 = vpop.f32.mrb[0].mxu0
  %v677 = vadd.f32 0.0, %v676
  %v678 = vpop.f32.mrb[0].mxu0
  %679 = vmatprep.mubr.bf16.mxu0 0
  %680 = vmatmul.mubr.bf16.gmra.mrb[0].mxu0 %v636
  %v681 = vpop.f32.mrb[0].mxu0
  %v682 = vadd.f32 0.0, %v681
  %v683 = vpop.f32.mrb[0].mxu0
  %v684 = vpop.f32.mrb[0].mxu0
  %v685 = vadd.f32 0.0, %v684
  %v686 = vpop.f32.mrb[0].mxu0
  %687 = vdwg.mxu0
  %692 = vrot.lane.b32.xlu0 %v674, 122
  %v693 = vpop.permute.xlu0 %692
  %694 = vrot.lane.b32.xlu0 %v677, 122
  %v695 = vpop.permute.xlu0 %694
  %696 = vrot.lane.b32.xlu0 %v682, 122
  %v697 = vpop.permute.xlu0 %696
  %698 = vrot.lane.b32.xlu0 %v685, 122
  %v699 = vpop.permute.xlu0 %698
  %vm704 = vcmask 351232
  %v705 = vsel %vm704, %v693, 0.0
  %v706 = vsel %vm704, %v695, 0.0
  %v707 = vsel %vm704, %v697, 0.0
  %v708 = vsel %vm704, %v699, 0.0
  %v709 = vsel %vm80, %v705, 0.0
  %v710 = vsel %vm80, %v706, 0.0
  %v711 = vsel %vm80, %v707, 0.0
  %v712 = vsel %vm80, %v708, 0.0
  %v713 = vadd.f32 %v618, %v709
  %v714 = vadd.f32 %v619, %v710
  %v715 = vadd.f32 %v620, %v711
  %v716 = vadd.f32 %v621, %v712
  %s717 = scalar_lea.vmem %s1, 112
  %v718 = vld [vmem:[%s717] sm:$0xf]
  %v719 = vld [vmem:[%s717 + $0x4] sm:$0xf]
  %v720 = vld [vmem:[%s717 + $0x8] sm:$0xf]
  %v721 = vld [vmem:[%s717 + $0xc] sm:$0xf]
  %v726 = vunpack.c.l.b16 %v718
  %v727 = vunpack.c.l.b16 %v719
  %v728 = vunpack.c.l.b16 %v720
  %v729 = vunpack.c.l.b16 %v721
  %v730 = vpack.c.b16 %v727, %v726
  %v731 = vpack.c.b16 %v729, %v728
  %734 = vmatprep.subr.bf16.mxu0 0
  %735 = vmatpush1.bf16.msra.mxu0 %v44
  %736 = vmatprep.subr.bf16.mxu0 0
  %737 = vmatpush1.bf16.msra.mxu0 %v45
  %738 = vmatprep.subr.bf16.mxu0 0
  %739 = vmatpush1.bf16.msra.mxu0 %v46
  %740 = vmatprep.subr.bf16.mxu0 0
  %741 = vmatpush1.bf16.msra.mxu0 %v47
  %742 = vmatprep.subr.bf16.mxu0 0
  %743 = vmatpush1.bf16.msra.mxu0 %v48
  %744 = vmatprep.subr.bf16.mxu0 0
  %745 = vmatpush1.bf16.msra.mxu0 %v49
  %746 = vmatprep.subr.bf16.mxu0 0
  %747 = vmatpush1.bf16.msra.mxu0 %v50
  %748 = vmatprep.subr.bf16.mxu0 0
  %749 = vmatpush1.bf16.msra.mxu0 %v51
  %750 = vmatprep.subr.bf16.mxu0 0
  %751 = vmatpush1.bf16.msra.mxu0 0
  %752 = vmatprep.subr.bf16.mxu0 0
  %753 = vmatpush1.bf16.msra.mxu0 0
  %754 = vmatprep.subr.bf16.mxu0 0
  %755 = vmatpush1.bf16.msra.mxu0 0
  %756 = vmatprep.subr.bf16.mxu0 0
  %757 = vmatpush1.bf16.msra.mxu0 0
  %758 = vmatprep.subr.bf16.mxu0 0
  %759 = vmatpush1.bf16.msra.mxu0 0
  %760 = vmatprep.subr.bf16.mxu0 0
  %761 = vmatpush1.bf16.msra.mxu0 0
  %762 = vmatprep.subr.bf16.mxu0 0
  %763 = vmatpush1.bf16.msra.mxu0 0
  %764 = vmatprep.subr.bf16.mxu0 0
  %765 = vmatpush1.bf16.msra.mxu0 0
  %766 = vmatprep.mubr.bf16.mxu0 0
  %767 = vmatmul.mubr.bf16.gmra.mrb[0].mxu0 %v730
  %v768 = vpop.f32.mrb[0].mxu0
  %v769 = vadd.f32 0.0, %v768
  %v770 = vpop.f32.mrb[0].mxu0
  %v771 = vpop.f32.mrb[0].mxu0
  %v772 = vadd.f32 0.0, %v771
  %v773 = vpop.f32.mrb[0].mxu0
  %774 = vmatprep.mubr.bf16.mxu0 0
  %775 = vmatmul.mubr.bf16.gmra.mrb[0].mxu0 %v731
  %v776 = vpop.f32.mrb[0].mxu0
  %v777 = vadd.f32 0.0, %v776
  %v778 = vpop.f32.mrb[0].mxu0
  %v779 = vpop.f32.mrb[0].mxu0
  %v780 = vadd.f32 0.0, %v779
  %v781 = vpop.f32.mrb[0].mxu0
  %782 = vdwg.mxu0
  %787 = vrot.lane.b32.xlu0 %v769, 121
  %v788 = vpop.permute.xlu0 %787
  %789 = vrot.lane.b32.xlu0 %v772, 121
  %v790 = vpop.permute.xlu0 %789
  %791 = vrot.lane.b32.xlu0 %v777, 121
  %v792 = vpop.permute.xlu0 %791
  %793 = vrot.lane.b32.xlu0 %v780, 121
  %v794 = vpop.permute.xlu0 %793
  %vm799 = vcmask 343040
  %v800 = vsel %vm799, %v788, 0.0
  %v801 = vsel %vm799, %v790, 0.0
  %v802 = vsel %vm799, %v792, 0.0
  %v803 = vsel %vm799, %v794, 0.0
  %v804 = vadd.f32 %v713, %v800
  %v805 = vadd.f32 %v714, %v801
  %v806 = vadd.f32 %v715, %v802
  %v807 = vadd.f32 %v716, %v803
  %s808 = scalar_lea.vmem %s1, 128
  %v809 = vld [vmem:[%s808] sm:$0xf]
  %v810 = vld [vmem:[%s808 + $0x4] sm:$0xf]
  %v811 = vld [vmem:[%s808 + $0x8] sm:$0xf]
  %v812 = vld [vmem:[%s808 + $0xc] sm:$0xf]
  %v817 = vunpack.c.l.b16 %v809
  %v818 = vunpack.c.l.b16 %v810
  %v819 = vunpack.c.l.b16 %v811
  %v820 = vunpack.c.l.b16 %v812
  %v821 = vpack.c.b16 %v818, %v817
  %v822 = vpack.c.b16 %v820, %v819
  %825 = vmatprep.subr.bf16.mxu0 0
  %826 = vmatpush1.bf16.msra.mxu0 %v44
  %827 = vmatprep.subr.bf16.mxu0 0
  %828 = vmatpush1.bf16.msra.mxu0 %v45
  %829 = vmatprep.subr.bf16.mxu0 0
  %830 = vmatpush1.bf16.msra.mxu0 %v46
  %831 = vmatprep.subr.bf16.mxu0 0
  %832 = vmatpush1.bf16.msra.mxu0 %v47
  %833 = vmatprep.subr.bf16.mxu0 0
  %834 = vmatpush1.bf16.msra.mxu0 %v48
  %835 = vmatprep.subr.bf16.mxu0 0
  %836 = vmatpush1.bf16.msra.mxu0 %v49
  %837 = vmatprep.subr.bf16.mxu0 0
  %838 = vmatpush1.bf16.msra.mxu0 %v50
  %839 = vmatprep.subr.bf16.mxu0 0
  %840 = vmatpush1.bf16.msra.mxu0 %v51
  %841 = vmatprep.subr.bf16.mxu0 0
  %842 = vmatpush1.bf16.msra.mxu0 0
  %843 = vmatprep.subr.bf16.mxu0 0
  %844 = vmatpush1.bf16.msra.mxu0 0
  %845 = vmatprep.subr.bf16.mxu0 0
  %846 = vmatpush1.bf16.msra.mxu0 0
  %847 = vmatprep.subr.bf16.mxu0 0
  %848 = vmatpush1.bf16.msra.mxu0 0
  %849 = vmatprep.subr.bf16.mxu0 0
  %850 = vmatpush1.bf16.msra.mxu0 0
  %851 = vmatprep.subr.bf16.mxu0 0
  %852 = vmatpush1.bf16.msra.mxu0 0
  %853 = vmatprep.subr.bf16.mxu0 0
  %854 = vmatpush1.bf16.msra.mxu0 0
  %855 = vmatprep.subr.bf16.mxu0 0
  %856 = vmatpush1.bf16.msra.mxu0 0
  %857 = vmatprep.mubr.bf16.mxu0 0
  %858 = vmatmul.mubr.bf16.gmra.mrb[0].mxu0 %v821
  %v859 = vpop.f32.mrb[0].mxu0
  %v860 = vadd.f32 0.0, %v859
  %v861 = vpop.f32.mrb[0].mxu0
  %v862 = vpop.f32.mrb[0].mxu0
  %v863 = vadd.f32 0.0, %v862
  %v864 = vpop.f32.mrb[0].mxu0
  %865 = vmatprep.mubr.bf16.mxu0 0
  %866 = vmatmul.mubr.bf16.gmra.mrb[0].mxu0 %v822
  %v867 = vpop.f32.mrb[0].mxu0
  %v868 = vadd.f32 0.0, %v867
  %v869 = vpop.f32.mrb[0].mxu0
  %v870 = vpop.f32.mrb[0].mxu0
  %v871 = vadd.f32 0.0, %v870
  %v872 = vpop.f32.mrb[0].mxu0
  %873 = vdwg.mxu0
  %878 = vrot.lane.b32.xlu0 %v860, 120
  %v879 = vpop.permute.xlu0 %878
  %880 = vrot.lane.b32.xlu0 %v863, 120
  %v881 = vpop.permute.xlu0 %880
  %882 = vrot.lane.b32.xlu0 %v868, 120
  %v883 = vpop.permute.xlu0 %882
  %884 = vrot.lane.b32.xlu0 %v871, 120
  %v885 = vpop.permute.xlu0 %884
  %vm890 = vcmask 334848
  %v891 = vsel %vm890, %v879, 0.0
  %v892 = vsel %vm890, %v881, 0.0
  %v893 = vsel %vm890, %v883, 0.0
  %v894 = vsel %vm890, %v885, 0.0
  %v895 = vsel %vm81, %v891, 0.0
  %v896 = vsel %vm81, %v892, 0.0
  %v897 = vsel %vm81, %v893, 0.0
  %v898 = vsel %vm81, %v894, 0.0
  %v899 = vadd.f32 %v804, %v895
  %v900 = vadd.f32 %v805, %v896
  %v901 = vadd.f32 %v806, %v897
  %v902 = vadd.f32 %v807, %v898
  %vm903 = vcmask 400384
  %904 = vst.msk [vmem:[%s2] sm:$0xff] %vm903, %v899
  %905 = vst.msk [vmem:[%s2 + $0x8] sm:$0xff] %vm903, %v900
  %906 = vst.msk [vmem:[%s2 + $0x10] sm:$0xff] %vm903, %v901
  %907 = vst.msk [vmem:[%s2 + $0x18] sm:$0xff] %vm903, %v902
  // Predicated region
  $region10: #{relu_conv2d.1} parent=0 // pred_check
    _
  $region11: #{relu_conv2d.1} parent=0 // pred_check_branch
    %909 = sbr.rel (0) target = $region13
  $region12: #{relu_conv2d.1} parent=0 // pred_region
    _
  $region13: #{relu_conv2d.1} parent=0 // pred_fallthru
    _
  // Predicated region
  $region14: #{relu_conv2d.1} parent=0 // pred_check
    _
  $region15: #{relu_conv2d.1} parent=0 // pred_check_branch
    %911 = sbr.rel (0) target = $region17
  $region16: #{relu_conv2d.1} parent=0 // pred_region
    _
  $region17: #{relu_conv2d.1} parent=0 // pred_fallthru
    _

</llo_original>
